<compile_context>
chip_gen: v7x
topology: tpu7x:2x2x1
jax: 0.10.0
libtpu: 0.0.40
codegen_flags: <defaults>
</compile_context>

<pallas_src>
import functools

import numpy as np
import jax
import jax.numpy as jnp
from jax.experimental import pallas as pl
from jax.experimental.pallas import tpu as pltpu


N_BITS = 3
A = 2 ** N_BITS            # 8 addresses
LANES = 128
GROUP = LANES // A         # 16 batch rows packed per 128-lane output row
K = GROUP * N_BITS         # 48 packed features per lane-dense input row
K2 = 2 * K                 # 96 = merged contraction width (a_0 | a_1)


def make_address_params(n_bits: int = N_BITS):
    """b_0, b_1 exactly as AddressLayer.build() constructs them."""
    mul = 2 ** (n_bits - 1 - jnp.arange(n_bits))            # MSB first
    idx = jnp.arange(2 ** n_bits)[:, None]
    b = (idx // mul[None, :]) % 2                            # (A, n_bits) in {0,1}
    b_0 = b.astype(jnp.float32)                              # b.float()
    b_1 = (-1 - b).astype(jnp.float32)                       # (~b).float() (int64 NOT)
    return b_0, b_1


def _packed_weight(dtype=jnp.bfloat16):
    """Stacked block-diagonal weight W (96, 128); a compile-time constant.

    W[3g+d,    8g'+a] = b_0[a, d] * (g == g')
    W[48+3g+d, 8g'+a] = b_1[a, d] * (g == g'),  b_1 = -1 - b_0
    Entries are in {0, 1, -1, -2}: exactly representable in bf16.
    """
    k = jnp.arange(K)
    g_in, d_in = k // N_BITS, k % N_BITS
    lane = jnp.arange(LANES)
    g_out, a_out = lane // A, lane % A
    b0 = (a_out[None, :] // (2 ** (N_BITS - 1 - d_in))[:, None]) % 2    # (K, 128)
    same = g_in[:, None] == g_out[None, :]
    w0 = jnp.where(same, b0, 0)
    w1 = jnp.where(same, -1 - b0, 0)
    return jnp.concatenate([w0, w1], axis=0).astype(dtype)              # (96, 128)


def _address_kernel(w_ref, a0_ref, a1_ref, out_ref):
    """out[r, 8g+a] = sum_d a0[G*R+g, d]*b0[a, d] + a1[G*R+g, d]*b1[a, d]."""
    # Lane-concatenate the two 48-wide tiles into one (tbr, 96) LHS so a single
    # MXU pass per 8 LHS rows covers both terms (halves vmatmul pushes).  The
    # concat is done on 32-bit lanes, then one cast to bf16 (single-pass MXU;
    # weights are exact in bf16, activations round at <= 2^-8 relative).
    lhs = jnp.concatenate(
        [a0_ref[...].astype(jnp.float32), a1_ref[...].astype(jnp.float32)],
        axis=-1,
    ).astype(jnp.bfloat16)
    out_ref[...] = jnp.dot(
        lhs, w_ref[...], preferred_element_type=jnp.float32
    ).astype(out_ref.dtype)


def _pick_block_rows(rows: int, block_rows: int) -> int:
    """Tile (in lane-dense rows): single block when tiny, >=2 grid steps otherwise."""
    single_step_max = max(16, min(block_rows, 256))
    if rows <= single_step_max:
        return rows                                   # full-dim block, one grid step
    target = min(block_rows, pl.cdiv(rows, 2))        # guarantee >= 2 grid steps
    return max(16, (target // 16) * 16)               # sublane / bf16-safe multiple


@functools.partial(jax.jit, static_argnames=("block_rows",))
def address_layer_forward(a_0, a_1, *, block_rows: int = 2048):
    """Pallas TPU implementation of AddressLayer.forward (n_bits = 3).

    block_rows is in lane-dense rows (16 batch rows each).  2048 (~6 MiB of
    double-buffered VMEM) is safe on v5e/v6e/v7x defaults; 4096 amortizes step
    overhead better on v7x and still fits its default scoped VMEM.
    """
    B, D = a_0.shape
    assert D == N_BITS and a_1.shape == (B, D)

    # Pack 16 batch rows per 128-lane row (free row-major reshapes); pad if ragged.
    b_pad = pl.cdiv(B, GROUP) * GROUP
    if b_pad != B:
        pad = ((0, b_pad - B), (0, 0))
        a_0 = jnp.pad(a_0, pad)
        a_1 = jnp.pad(a_1, pad)
    rows = b_pad // GROUP

    a0r = a_0.reshape(rows, K)          # caller dtype kept (no forced f32 copy)
    a1r = a_1.reshape(rows, K)
    w = _packed_weight(jnp.bfloat16)    # constant-folded by XLA

    tbr = _pick_block_rows(rows, block_rows)
    grid = (pl.cdiv(rows, tbr),)        # ragged final block handled by Pallas

    cost = pl.CostEstimate(
        flops=2 * rows * LANES * K2,
        transcendentals=0,
        bytes_accessed=(a0r.size * a0r.dtype.itemsize
                        + a1r.size * a1r.dtype.itemsize
                        + w.size * w.dtype.itemsize
                        + rows * LANES * 4),
    )

    out_lane = pl.pallas_call(
        _address_kernel,
        out_shape=jax.ShapeDtypeStruct((rows, LANES), jnp.float32),
        grid=grid,
        in_specs=[
            pl.BlockSpec((K2, LANES), lambda i: (0, 0)),   # resident weight, DMA'd once
            pl.BlockSpec((tbr, K), lambda i: (i, 0)),
            pl.BlockSpec((tbr, K), lambda i: (i, 0)),
        ],
        out_specs=pl.BlockSpec((tbr, LANES), lambda i: (i, 0)),
        compiler_params=pltpu.CompilerParams(
            dimension_semantics=("parallel",),             # v7x: batch split on 2 TCs
        ),
        cost_estimate=cost,
    )(w, a0r, a1r)

    # Undo lane-dense packing: (rows, 128) row-major == (b_pad, 8).
    return out_lane.reshape(b_pad, A)[:B]


if __name__ == "__main__":
    key = jax.random.PRNGKey(0)
    keys = jax.random.split(key, 6)

    b_0, b_1 = make_address_params(N_BITS)
    b0_np = np.asarray(b_0, dtype=np.float64)
    b1_np = np.asarray(b_1, dtype=np.float64)

    def ref_exact(x0, x1):
        # Exact host reference of the f32 torch math.
        return (np.asarray(x0, np.float64) @ b0_np.T
                + np.asarray(x1, np.float64) @ b1_np.T)

    def ref_bf16_acts(x0, x1):
        # Same math with activations rounded to bf16 (the kernel's single-pass
        # MXU budget); weights are exact in bf16 so nothing else changes.
        r0 = np.asarray(jnp.asarray(x0).astype(jnp.bfloat16).astype(jnp.float32), np.float64)
        r1 = np.asarray(jnp.asarray(x1).astype(jnp.bfloat16).astype(jnp.float32), np.float64)
        return r0 @ b0_np.T + r1 @ b1_np.T

    def check(x0, x1, out):
        out = np.asarray(out, np.float64)
        assert out.shape == (x0.shape[0], A)
        # Tight: kernel math/packing is exact given bf16-rounded activations.
        np.testing.assert_allclose(out, ref_bf16_acts(x0, x1), rtol=1e-5, atol=1e-5)
        # Sanity vs exact f32 math: error bounded by the bf16 activation rounding.
        bound = (2.0 ** -8) * (np.abs(np.asarray(x0, np.float64)) @ np.abs(b0_np).T
                               + np.abs(np.asarray(x1, np.float64)) @ np.abs(b1_np).T) + 1e-4
        assert np.all(np.abs(out - ref_exact(x0, x1)) <= bound)

    # Case 1: batch a multiple of the 16-row lane packing (single grid step).
    B1 = 64
    a_0 = jax.random.normal(keys[0], (B1, N_BITS), dtype=jnp.float32)
    a_1 = jax.random.normal(keys[1], (B1, N_BITS), dtype=jnp.float32)
    check(a_0, a_1, jax.block_until_ready(address_layer_forward(a_0, a_1)))

    # Case 2: ragged batch (exercises the wrapper padding path).
    B2 = 37
    c_0 = jax.random.normal(keys[2], (B2, N_BITS), dtype=jnp.float32)
    c_1 = jax.random.normal(keys[3], (B2, N_BITS), dtype=jnp.float32)
    check(c_0, c_1, jax.block_until_ready(address_layer_forward(c_0, c_1)))

    # Case 3: multi-step pipelined grid with a ragged final block (small
    # block_rows keeps the test tiny while exercising the tiled path).
    B3 = 3200
    d_0 = jax.random.normal(keys[4], (B3, N_BITS), dtype=jnp.float32)
    d_1 = jax.random.normal(keys[5], (B3, N_BITS), dtype=jnp.float32)
    check(d_0, d_1,
          jax.block_until_ready(address_layer_forward(d_0, d_1, block_rows=64)))

    print("KERNEL_OK")
</pallas_src>

<mosaic_0001>
module attributes {stable_mosaic.version = 11 : i64} {
  func.func @_address_kernel(%arg0: i32, %arg1: memref<96x128xbf16, #tpu.memory_space<vmem>>, %arg2: memref<4x48xf32, #tpu.memory_space<vmem>>, %arg3: memref<4x48xf32, #tpu.memory_space<vmem>>, %arg4: memref<4x128xf32, #tpu.memory_space<vmem>>) attributes {dimension_semantics = [#tpu.dimension_semantics<parallel>], iteration_bounds = array<i64: 1>, scalar_prefetch = 0 : i64, scratch_operands = 0 : i64, tpu.core_type = #tpu.core_type<tc>, window_params = [{pipeline_mode = #tpu.pipeline_mode<synchronous>, transform_indices = @transform_0, window_bounds = array<i64: 96, 128>}, {transform_indices = @transform_1, window_bounds = array<i64: 4, 48>}, {transform_indices = @transform_2, window_bounds = array<i64: 4, 48>}, {transform_indices = @transform_3, window_bounds = array<i64: 4, 128>}]} {
    %c0 = arith.constant 0 : index
    %c0_0 = arith.constant 0 : index
    %0 = vector.load %arg2[%c0, %c0_0] : memref<4x48xf32, #tpu.memory_space<vmem>>, vector<4x48xf32>
    %c0_1 = arith.constant 0 : index
    %c0_2 = arith.constant 0 : index
    %1 = vector.load %arg3[%c0_1, %c0_2] : memref<4x48xf32, #tpu.memory_space<vmem>>, vector<4x48xf32>
    %2 = tpu.concatenate %0, %1 in 1 : vector<4x48xf32>, vector<4x48xf32> -> vector<4x96xf32>
    %3 = arith.truncf %2 : vector<4x96xf32> to vector<4x96xbf16>
    %c0_3 = arith.constant 0 : index
    %c0_4 = arith.constant 0 : index
    %4 = vector.load %arg1[%c0_3, %c0_4] : memref<96x128xbf16, #tpu.memory_space<vmem>>, vector<96x128xbf16>
    %cst = arith.constant dense<0.000000e+00> : vector<4x128xf32>
    %5 = tpu.matmul %3, %4, %cst {dimension_numbers = #tpu.dot_dimension_numbers<[1], [0], [0], [1], [0, 0, 1, 1], [], []>} : vector<4x96xbf16>, vector<96x128xbf16>, vector<4x128xf32> -> vector<4x128xf32>
    %c0_5 = arith.constant 0 : index
    %c0_6 = arith.constant 0 : index
    %6 = vector.load %arg4[%c0_5, %c0_6] : memref<4x128xf32, #tpu.memory_space<vmem>>, vector<4x128xf32>
    tpu.vector_store %arg4[%c0_5, %c0_6], %5 {strides = array<i32>} : memref<4x128xf32, #tpu.memory_space<vmem>>, vector<4x128xf32>,
    return
  }
  func.func @transform_0(%arg0: i32) -> (i32, i32) {
    %c0_i32 = arith.constant 0 : i32
    %c0_i32_0 = arith.constant 0 : i32
    %c0_i32_1 = arith.constant 0 : i32
    return %c0_i32, %c0_i32_0 : i32, i32
  }
  func.func @transform_1(%arg0: i32) -> (i32, i32) {
    %c0_i32 = arith.constant 0 : i32
    %c0_i32_0 = arith.constant 0 : i32
    return %arg0, %c0_i32 : i32, i32
  }
  func.func @transform_2(%arg0: i32) -> (i32, i32) {
    %c0_i32 = arith.constant 0 : i32
    %c0_i32_0 = arith.constant 0 : i32
    return %arg0, %c0_i32 : i32, i32
  }
  func.func @transform_3(%arg0: i32) -> (i32, i32) {
    %c0_i32 = arith.constant 0 : i32
    %c0_i32_0 = arith.constant 0 : i32
    return %arg0, %c0_i32 : i32, i32
  }
}

</mosaic_0001>

<llo_original>
// kernel: address_layer_forward.1
$region0: #{address_layer_forward.1}
  #allocation0 [shape = 'u32[]', space=smem, size = 0x4, offset = 0x4, fixed_abs, tag = 'smem constant byte address 0x4 - core index']
  #allocation1 [shape = 'u32[144,128]{1,0:T(1,128)}', space=vmem, size = 0x12000, scoped, tag = 'internal scratch']
  %s0 = inlined_call_operand.vmem [shape: bf16[96,128], index: 0, kind: input, shape index: {}]
  %s1 = inlined_call_operand.vmem [shape: f32[4,48], index: 1, kind: input, shape index: {}]
  %s2 = inlined_call_operand.vmem [shape: f32[4,48], index: 2, kind: input, shape index: {}]
  %s3 = inlined_call_operand.vmem [shape: f32[4,128], index: 3, kind: output, shape index: {}]
  %s4 = sld [smem:[#allocation0]]
  $region22: #{address_layer_forward.1} parent=0
    _
  %s6 = ssub.s32 1, %s4
  %s7 = scalar_select 0, %s6, %s4
  // Predicated region
  $region2: #{address_layer_forward.1} parent=0 // pred_check
    _
  $region3: #{address_layer_forward.1} parent=0 // pred_check_branch
    %9 = sbr.rel (0) target = $region5
  $region4: #{address_layer_forward.1} parent=0 // pred_region
    _
  $region5: #{address_layer_forward.1} parent=0 // pred_fallthru
    _
  // Predicated region
  $region6: #{address_layer_forward.1} parent=0 // pred_check
    _
  $region7: #{address_layer_forward.1} parent=0 // pred_check_branch
    %11 = sbr.rel (0) target = $region9
  $region8: #{address_layer_forward.1} parent=0 // pred_region
    _
  $region9: #{address_layer_forward.1} parent=0 // pred_fallthru
    _
  // Predicated region
  $region10: #{address_layer_forward.1} parent=0 // pred_check
    _
  $region11: #{address_layer_forward.1} parent=0 // pred_check_branch
    %13 = sbr.rel (0) target = $region13
  $region12: #{address_layer_forward.1} parent=0 // pred_region
    _
  $region13: #{address_layer_forward.1} parent=0 // pred_fallthru
    _
  %v15 = vld [vmem:[%s1] sm:$0xf]
  %v16 = vld [vmem:[%s2] sm:$0xf]
  %18 = vrot.lane.b32.xlu0 %v16, 48
  %v19 = vpop.permute.xlu0 %18
  %vm21 = vcmask 392192
  %v22 = vsel %vm21, %v15, %v19
  %v23 = vpack.c.bf16 %v22, %v22
  %v24 = vld [vmem:[%s0] sm:$0xf]
  %v25 = vld [vmem:[%s0 + $0x4] sm:$0xf]
  %v26 = vld [vmem:[%s0 + $0x8] sm:$0xf]
  %v27 = vld [vmem:[%s0 + $0xc] sm:$0xf]
  %v28 = vld [vmem:[%s0 + $0x10] sm:$0xf]
  %v29 = vld [vmem:[%s0 + $0x14] sm:$0xf]
  %v30 = vld [vmem:[%s0 + $0x18] sm:$0xf]
  %v31 = vld [vmem:[%s0 + $0x1c] sm:$0xf]
  %v32 = vld [vmem:[%s0 + $0x20] sm:$0xf]
  %v33 = vld [vmem:[%s0 + $0x24] sm:$0xf]
  %v34 = vld [vmem:[%s0 + $0x28] sm:$0xf]
  %v35 = vld [vmem:[%s0 + $0x2c] sm:$0xf]
  %v48 = vunpack.c.l.b16 %v24
  %v49 = vunpack.c.l.b16 %v25
  %v50 = vunpack.c.l.b16 %v26
  %v51 = vunpack.c.l.b16 %v27
  %v52 = vunpack.c.l.b16 %v28
  %v53 = vunpack.c.l.b16 %v29
  %v54 = vunpack.c.l.b16 %v30
  %v55 = vunpack.c.l.b16 %v31
  %v56 = vunpack.c.l.b16 %v32
  %v57 = vunpack.c.l.b16 %v33
  %v58 = vunpack.c.l.b16 %v34
  %v59 = vunpack.c.l.b16 %v35
  %v60 = vpack.c.b16 %v49, %v48
  %v61 = vpack.c.b16 %v51, %v50
  %v62 = vpack.c.b16 %v53, %v52
  %v63 = vpack.c.b16 %v55, %v54
  %v64 = vpack.c.b16 %v57, %v56
  %v65 = vpack.c.b16 %v59, %v58
  %vm72 = vcmask 785408
  %v74 = vsel %vm72, %v23, 0
  %76 = vmatprep.subr.bf16.mxu0 0
  %77 = vmatpush1.bf16.msra.mxu0 %v60
  %78 = vmatprep.subr.bf16.mxu0 0
  %79 = vmatpush1.bf16.msra.mxu0 %v61
  %80 = vmatprep.subr.bf16.mxu0 0
  %81 = vmatpush1.bf16.msra.mxu0 %v62
  %82 = vmatprep.subr.bf16.mxu0 0
  %83 = vmatpush1.bf16.msra.mxu0 %v63
  %84 = vmatprep.subr.bf16.mxu0 0
  %85 = vmatpush1.bf16.msra.mxu0 %v64
  %86 = vmatprep.subr.bf16.mxu0 0
  %87 = vmatpush1.bf16.msra.mxu0 %v65
  %88 = vmatprep.subr.bf16.mxu0 0
  %89 = vmatpush1.bf16.msra.mxu0 0
  %90 = vmatprep.subr.bf16.mxu0 0
  %91 = vmatpush1.bf16.msra.mxu0 0
  %92 = vmatprep.subr.bf16.mxu0 0
  %93 = vmatpush1.bf16.msra.mxu0 0
  %94 = vmatprep.subr.bf16.mxu0 0
  %95 = vmatpush1.bf16.msra.mxu0 0
  %96 = vmatprep.subr.bf16.mxu0 0
  %97 = vmatpush1.bf16.msra.mxu0 0
  %98 = vmatprep.subr.bf16.mxu0 0
  %99 = vmatpush1.bf16.msra.mxu0 0
  %100 = vmatprep.subr.bf16.mxu0 0
  %101 = vmatpush1.bf16.msra.mxu0 0
  %102 = vmatprep.subr.bf16.mxu0 0
  %103 = vmatpush1.bf16.msra.mxu0 0
  %104 = vmatprep.subr.bf16.mxu0 0
  %105 = vmatpush1.bf16.msra.mxu0 0
  %106 = vmatprep.subr.bf16.mxu0 0
  %107 = vmatpush1.bf16.msra.mxu0 0
  %108 = vmatprep.mubr.bf16.mxu0 0
  %109 = vmatmul.mubr.bf16.gmra.mrb[0].mxu0 %v74
  %v110 = vpop.f32.mrb[0].mxu0
  %v111 = vadd.f32 0.0, %v110
  %v112 = vpop.f32.mrb[0].mxu0
  %v113 = vpop.f32.mrb[0].mxu0
  %v114 = vpop.f32.mrb[0].mxu0
  %115 = vdwg.mxu0
  %116 = vst [vmem:[%s3] sm:$0xf] %v111
  // Predicated region
  $region14: #{address_layer_forward.1} parent=0 // pred_check
    _
  $region15: #{address_layer_forward.1} parent=0 // pred_check_branch
    %118 = sbr.rel (0) target = $region17
  $region16: #{address_layer_forward.1} parent=0 // pred_region
    _
  $region17: #{address_layer_forward.1} parent=0 // pred_fallthru
    _
  // Predicated region
  $region18: #{address_layer_forward.1} parent=0 // pred_check
    _
  $region19: #{address_layer_forward.1} parent=0 // pred_check_branch
    %120 = sbr.rel (0) target = $region21
  $region20: #{address_layer_forward.1} parent=0 // pred_region
    _
  $region21: #{address_layer_forward.1} parent=0 // pred_fallthru
    _

</llo_original>
